<compile_context>
chip_gen: v6e
topology: v6e:2x2x1
jax: 0.10.0
libtpu: 0.0.40
codegen_flags: <defaults>
</compile_context>

<pallas_src>
import jax
import jax.numpy as jnp
from jax.experimental import pallas as pl
from jax.experimental.pallas import tpu as pltpu


def find_multiple(n: int, k: int) -> int:
    if n % k == 0:
        return n
    return n + k - n % k


# ----------------------------------------------------------------------------
# TPU-generation-aware defaults
# ----------------------------------------------------------------------------
def _tpu_generation():
    try:
        kind = jax.devices()[0].device_kind.lower()
    except Exception:
        return None
    for g in ("v7", "v6", "v5"):
        if g in kind:
            return g
    return None


def _default_row_tile() -> int:
    gen = _tpu_generation()
    if gen in ("v6", "v7"):
        return 512
    return 256  # v5e / unknown


def _default_hidden_tile() -> int:
    gen = _tpu_generation()
    if gen == "v6":
        return 512
    return 256  # v5e / v7x (64 MiB VMEM) / unknown


def _vmem_cap_bytes() -> int:
    gen = _tpu_generation()
    if gen == "v7":
        return 56 << 20   # 64 MiB physical per TensorCore
    return 110 << 20      # 128 MiB physical on v5e / v6e


def _sublane_multiple(dtype) -> int:
    # f32 -> 8, bf16 -> 16, int8/fp8 -> 32 (native packing tile rows)
    bits = jnp.dtype(dtype).itemsize * 8
    return max(8, 256 // bits)


def _vmem_limit_bytes(tm, th, td, D, dt_bytes) -> int:
    x_buf = 2 * tm * D * dt_bytes            # double-buffered x rows
    w13_buf = 2 * D * (2 * th) * dt_bytes    # double-buffered fused up-proj tile
    w2_buf = 2 * th * td * dt_bytes          # double-buffered down-proj tile
    out_buf = 2 * tm * td * dt_bytes         # double-buffered output rows
    acc = tm * td * 4                        # f32 accumulator scratch
    temps = 2 * tm * (2 * th) * 4            # f32 up-proj + gated intermediates
    total = x_buf + w13_buf + w2_buf + out_buf + acc + temps
    limit = int(total * 1.15) + (4 << 20)    # scheduling / spill headroom
    return max(32 << 20, min(_vmem_cap_bytes(), limit))


# ----------------------------------------------------------------------------
# Kernel
# ----------------------------------------------------------------------------
def _ffn_kernel(x_ref, w13_ref, w2_ref, o_ref, acc_ref):
    """One (m-tile, d-tile, h-tile) step of the SwiGLU FFN.

    Grid = (m tiles, D tiles, H tiles); H (reduction) is last / "arbitrary".

    x_ref   : (tm, D)        token rows (native dtype)
    w13_ref : (1, D, 2*th)   fused [W1^T | W3^T] column tile (native dtype)
    w2_ref  : (th, td)       W2^T tile (native dtype)
    o_ref   : (tm, td)       output rows (written on last h step)
    acc_ref : (tm, td) f32   VMEM accumulator across the H (reduction) axis
    """
    h = pl.program_id(2)
    th = w2_ref.shape[0]

    # Fused up-projection: one MXU matmul for both W1 and W3 column tiles.
    up = jnp.dot(x_ref[...], w13_ref[0],
                 preferred_element_type=jnp.float32)          # (tm, 2*th) f32
    h1 = up[:, :th]
    h3 = up[:, th:]
    gated = (h1 * jax.nn.sigmoid(h1)) * h3                    # SiLU gate, f32

    # Down-projection contribution of this hidden tile (f32 MXU accumulation).
    partial = jnp.dot(gated.astype(w2_ref.dtype), w2_ref[...],
                      preferred_element_type=jnp.float32)     # (tm, td) f32

    # Write on first reduction step, accumulate otherwise (no memset pass).
    @pl.when(h == 0)
    def _():
        acc_ref[...] = partial

    @pl.when(h != 0)
    def _():
        acc_ref[...] += partial

    @pl.when(h == pl.num_programs(2) - 1)
    def _():
        # TODO(synk): ffn_dropout (p=0.1) is training-time; identity in eval.
        o_ref[...] = acc_ref[...].astype(o_ref.dtype)


# ----------------------------------------------------------------------------
# One-time weight preparation (keeps transposes off the per-call path)
# ----------------------------------------------------------------------------
def prepare_ffn_weights(w1, w3, w2, *, th=None):
    """w1, w3: (H, D); w2: (D, H)  (PyTorch nn.Linear weight layout).

    Returns:
      w13 : (nh, D, 2*th)  per-hidden-tile fused [W1^T | W3^T]
      w2t : (Hp, D)        W2^T, zero-padded so Hp % th == 0
      th  : the hidden tile size actually used
    """
    if th is None:
        th = _default_hidden_tile()
    H, D = w1.shape
    dt = w1.dtype
    Hp = find_multiple(H, 128)
    th = min(th, Hp)
    Hp = find_multiple(Hp, th)
    nh = Hp // th

    w1t = jnp.zeros((D, Hp), dt).at[:, :H].set(w1.T)
    w3t = jnp.zeros((D, Hp), dt).at[:, :H].set(w3.T)
    w2t = jnp.zeros((Hp, D), dt).at[:H, :].set(w2.T)

    # (D, Hp) -> (nh, D, th) per projection, then fuse along the last axis.
    w13 = jnp.concatenate(
        [w1t.reshape(D, nh, th).transpose(1, 0, 2),
         w3t.reshape(D, nh, th).transpose(1, 0, 2)],
        axis=-1)                                              # (nh, D, 2*th)
    return w13, w2t, th


# ----------------------------------------------------------------------------
# Wrapper
# ----------------------------------------------------------------------------
def feed_forward(x, w13, w2t, *, tm=None, td=None):
    """x: [B, T, D]; w13: (nh, D, 2*th); w2t: (Hp, D) from prepare_ffn_weights."""
    B, T, D = x.shape
    nh, _, two_th = w13.shape
    th = two_th // 2
    Hp = w2t.shape[0]
    dt_bytes = jnp.dtype(x.dtype).itemsize

    M = B * T
    x2 = x.reshape(M, D)

    # Token-axis tiling: clamp tm to the dtype's packing-aligned token count,
    # pad the remainder, slice after the call.
    if tm is None:
        tm = _default_row_tile()
    sub = _sublane_multiple(x.dtype)
    tm = min(tm, find_multiple(M, sub))
    M_pad = find_multiple(M, tm)
    if M_pad != M:
        x2 = jnp.pad(x2, ((0, M_pad - M), (0, 0)))
    nm = M_pad // tm

    # Output-D tiling ("parallel" axis). Default: one D tile. For the decode
    # case (single m-tile) on v7x, split D in two so both TensorCores work.
    if td is None:
        td = D
        if nm == 1 and D % 256 == 0 and _tpu_generation() == "v7":
            td = D // 2
    if td <= 0 or D % td != 0 or (td != D and td % 128 != 0):
        td = D
    nd = D // td

    grid = (nm, nd, nh)

    # Accurate HBM-traffic advisory: weights are re-streamed per m-tile
    # (W13 additionally per D-tile); x is read once per m-tile, out written once.
    cost = pl.CostEstimate(
        flops=4 * M_pad * D * Hp * nd + 2 * M_pad * Hp * D,
        transcendentals=M_pad * Hp * nd,            # sigmoid in the SiLU gate
        bytes_accessed=int((2 * M_pad * D
                            + w13.size * nm * nd
                            + w2t.size * nm) * dt_bytes),
    )

    vmem_limit = _vmem_limit_bytes(tm, th, td, D, dt_bytes)

    out = pl.pallas_call(
        _ffn_kernel,
        out_shape=jax.ShapeDtypeStruct((M_pad, D), x.dtype),
        grid_spec=pltpu.PrefetchScalarGridSpec(
            num_scalar_prefetch=0,
            grid=grid,
            in_specs=[
                pl.BlockSpec((tm, D), lambda i, d, h: (i, 0)),            # x rows
                pl.BlockSpec((1, D, 2 * th), lambda i, d, h: (h, 0, 0)),  # W13 tile
                pl.BlockSpec((th, td), lambda i, d, h: (h, d)),           # W2^T tile
            ],
            out_specs=pl.BlockSpec((tm, td), lambda i, d, h: (i, d)),
            scratch_shapes=[pltpu.VMEM((tm, td), jnp.float32)],
        ),
        compiler_params=pltpu.CompilerParams(
            dimension_semantics=("parallel", "parallel", "arbitrary"),
            vmem_limit_bytes=vmem_limit,
        ),
        cost_estimate=cost,
    )(x2, w13, w2t)

    return out[:M].reshape(B, T, D)


# ----------------------------------------------------------------------------
# Plain-JAX reference (matches the PyTorch forward in eval mode)
# ----------------------------------------------------------------------------
def feed_forward_ref(x, w1, w3, w2):
    h1 = jnp.einsum("btd,hd->bth", x, w1)
    h3 = jnp.einsum("btd,hd->bth", x, w3)
    g = (h1 * jax.nn.sigmoid(h1)) * h3
    return jnp.einsum("bth,dh->btd", g, w2)


if __name__ == "__main__":
    # Small ModelArgs-consistent config: dim=128, multiple_of=128
    # hidden_dim = find_multiple(int(2 * 4 * dim / 3), multiple_of) = 384
    dim = 128
    multiple_of = 128
    hidden_dim = find_multiple(int(2 * (4 * dim) / 3), multiple_of)  # 384

    B, T = 2, 8
    key = jax.random.PRNGKey(0)
    kx, k1, k2, k3 = jax.random.split(key, 4)

    x = jax.random.normal(kx, (B, T, dim), dtype=jnp.float32)
    init = 0.02
    w1 = jax.random.normal(k1, (hidden_dim, dim), dtype=jnp.float32) * init
    w3 = jax.random.normal(k3, (hidden_dim, dim), dtype=jnp.float32) * init
    w2 = jax.random.normal(k2, (dim, hidden_dim), dtype=jnp.float32) * init

    # One-time weight layout prep (fusion + transpose + H-padding).
    w13, w2t, th = prepare_ffn_weights(w1, w3, w2)

    out = feed_forward(x, w13, w2t)
    out = jax.block_until_ready(out)

    ref = feed_forward_ref(x, w1, w3, w2)
    assert out.shape == (B, T, dim), out.shape
    assert jnp.allclose(out, ref, atol=1e-4, rtol=1e-3), "mismatch vs reference"

    print("KERNEL_OK")
</pallas_src>

<mosaic_0001>
module attributes {stable_mosaic.version = 11 : i64} {
  func.func @_ffn_kernel(%arg0: i32, %arg1: i32, %arg2: i32, %arg3: memref<16x128xf32, #tpu.memory_space<vmem>>, %arg4: memref<1x128x512xf32, #tpu.memory_space<vmem>>, %arg5: memref<256x128xf32, #tpu.memory_space<vmem>>, %arg6: memref<16x128xf32, #tpu.memory_space<vmem>>, %arg7: memref<16x128xf32, #tpu.memory_space<vmem>>) attributes {dimension_semantics = [#tpu.dimension_semantics<parallel>, #tpu.dimension_semantics<parallel>, #tpu.dimension_semantics<arbitrary>], iteration_bounds = array<i64: 1, 1, 2>, scalar_prefetch = 0 : i64, scratch_operands = 1 : i64, tpu.core_type = #tpu.core_type<tc>, window_params = [{transform_indices = @transform_0, window_bounds = array<i64: 16, 128>}, {transform_indices = @transform_1, window_bounds = array<i64: 1, 128, 512>}, {transform_indices = @transform_2, window_bounds = array<i64: 256, 128>}, {transform_indices = @transform_3, window_bounds = array<i64: 16, 128>}]} {
    %c0 = arith.constant 0 : index
    %c0_0 = arith.constant 0 : index
    %0 = vector.load %arg3[%c0, %c0_0] : memref<16x128xf32, #tpu.memory_space<vmem>>, vector<16x128xf32>
    %c0_1 = arith.constant 0 : index
    %c0_2 = arith.constant 0 : index
    %c0_3 = arith.constant 0 : index
    %1 = vector.load %arg4[%c0_1, %c0_2, %c0_3] : memref<1x128x512xf32, #tpu.memory_space<vmem>>, vector<1x128x512xf32>
    %2 = vector.shape_cast %1 : vector<1x128x512xf32> to vector<128x512xf32>
    %cst = arith.constant dense<0.000000e+00> : vector<16x512xf32>
    %3 = tpu.matmul %0, %2, %cst {dimension_numbers = #tpu.dot_dimension_numbers<[1], [0], [0], [1], [0, 0, 1, 1], [], []>} : vector<16x128xf32>, vector<128x512xf32>, vector<16x512xf32> -> vector<16x512xf32>
    %4 = vector.extract_strided_slice %3 {offsets = [0, 0], sizes = [16, 256], strides = [1, 1]} : vector<16x512xf32> to vector<16x256xf32>
    %5 = vector.extract_strided_slice %3 {offsets = [0, 256], sizes = [16, 256], strides = [1, 1]} : vector<16x512xf32> to vector<16x256xf32>
    %6 = arith.negf %4 : vector<16x256xf32>
    %7 = math.exp %6 : vector<16x256xf32>
    %cst_4 = arith.constant 1.000000e+00 : f32
    %8 = vector.broadcast %cst_4 : f32 to vector<16x256xf32>
    %9 = arith.addf %8, %7 : vector<16x256xf32>
    %10 = arith.divf %8, %9 : vector<16x256xf32>
    %11 = arith.mulf %4, %10 : vector<16x256xf32>
    %12 = arith.mulf %11, %5 : vector<16x256xf32>
    %c0_5 = arith.constant 0 : index
    %c0_6 = arith.constant 0 : index
    %13 = vector.load %arg5[%c0_5, %c0_6] : memref<256x128xf32, #tpu.memory_space<vmem>>, vector<256x128xf32>
    %cst_7 = arith.constant dense<0.000000e+00> : vector<16x128xf32>
    %14 = tpu.matmul %12, %13, %cst_7 {dimension_numbers = #tpu.dot_dimension_numbers<[1], [0], [0], [1], [0, 0, 1, 1], [], []>} : vector<16x256xf32>, vector<256x128xf32>, vector<16x128xf32> -> vector<16x128xf32>
    %c0_i32 = arith.constant 0 : i32
    %15 = arith.cmpi eq, %arg2, %c0_i32 : i32
    %16 = arith.extui %15 : i1 to i32
    %c0_i32_8 = arith.constant 0 : i32
    %17 = arith.cmpi ne, %16, %c0_i32_8 : i32
    scf.if %17 {
      %c0_12 = arith.constant 0 : index
      %c0_13 = arith.constant 0 : index
      %24 = vector.load %arg7[%c0_12, %c0_13] : memref<16x128xf32, #tpu.memory_space<vmem>>, vector<16x128xf32>
      tpu.vector_store %arg7[%c0_12, %c0_13], %14 {strides = array<i32>} : memref<16x128xf32, #tpu.memory_space<vmem>>, vector<16x128xf32>,
    } else {
    }
    %c0_i32_9 = arith.constant 0 : i32
    %18 = arith.cmpi ne, %arg2, %c0_i32_9 : i32
    %19 = arith.extui %18 : i1 to i32
    %c0_i32_10 = arith.constant 0 : i32
    %20 = arith.cmpi ne, %19, %c0_i32_10 : i32
    scf.if %20 {
      %c0_12 = arith.constant 0 : index
      %c0_13 = arith.constant 0 : index
      %24 = vector.load %arg7[%c0_12, %c0_13] : memref<16x128xf32, #tpu.memory_space<vmem>>, vector<16x128xf32>
      %25 = arith.addf %24, %14 : vector<16x128xf32>
      %c0_14 = arith.constant 0 : index
      %c0_15 = arith.constant 0 : index
      %26 = vector.load %arg7[%c0_14, %c0_15] : memref<16x128xf32, #tpu.memory_space<vmem>>, vector<16x128xf32>
      tpu.vector_store %arg7[%c0_14, %c0_15], %25 {strides = array<i32>} : memref<16x128xf32, #tpu.memory_space<vmem>>, vector<16x128xf32>,
    } else {
    }
    %c1_i32 = arith.constant 1 : i32
    %21 = arith.cmpi eq, %arg2, %c1_i32 : i32
    %22 = arith.extui %21 : i1 to i32
    %c0_i32_11 = arith.constant 0 : i32
    %23 = arith.cmpi ne, %22, %c0_i32_11 : i32
    scf.if %23 {
      %c0_12 = arith.constant 0 : index
      %c0_13 = arith.constant 0 : index
      %24 = vector.load %arg7[%c0_12, %c0_13] : memref<16x128xf32, #tpu.memory_space<vmem>>, vector<16x128xf32>
      %c0_14 = arith.constant 0 : index
      %c0_15 = arith.constant 0 : index
      %25 = vector.load %arg6[%c0_14, %c0_15] : memref<16x128xf32, #tpu.memory_space<vmem>>, vector<16x128xf32>
      tpu.vector_store %arg6[%c0_14, %c0_15], %24 {strides = array<i32>} : memref<16x128xf32, #tpu.memory_space<vmem>>, vector<16x128xf32>,
    } else {
    }
    return
  }
  func.func @transform_0(%arg0: i32, %arg1: i32, %arg2: i32) -> (i32, i32) {
    %c0_i32 = arith.constant 0 : i32
    %c0_i32_0 = arith.constant 0 : i32
    return %arg0, %c0_i32 : i32, i32
  }
  func.func @transform_1(%arg0: i32, %arg1: i32, %arg2: i32) -> (i32, i32, i32) {
    %c0_i32 = arith.constant 0 : i32
    %c0_i32_0 = arith.constant 0 : i32
    %c0_i32_1 = arith.constant 0 : i32
    return %arg2, %c0_i32, %c0_i32_0 : i32, i32, i32
  }
  func.func @transform_2(%arg0: i32, %arg1: i32, %arg2: i32) -> (i32, i32) {
    %c0_i32 = arith.constant 0 : i32
    return %arg2, %arg1 : i32, i32
  }
  func.func @transform_3(%arg0: i32, %arg1: i32, %arg2: i32) -> (i32, i32) {
    %c0_i32 = arith.constant 0 : i32
    return %arg0, %arg1 : i32, i32
  }
}

</mosaic_0001>

<llo_original>
// kernel: tpu_custom_call.1
$region0: #{tpu_custom_call.1}
  #allocation0 [shape = 'u32[]', space=smem, size = 0x4, offset = 0x4, fixed_abs, tag = 'smem constant byte address 0x4 - core index']
  #allocation1 [shape = 'u32[144,128]{1,0:T(1,128)}', space=vmem, size = 0x12000, scoped, tag = 'internal scratch']
  #allocation2 [shape = 'f32[16,128]{1,0:T(8,128)}', space=vmem, size = 0x2000, scoped, tag = 'scratch operand']
  %s0 = inlined_call_operand.hbm [shape: f32[16,128], index: 0, kind: input, shape index: {}]
  %s1 = inlined_call_operand.hbm [shape: f32[2,128,512], index: 1, kind: input, shape index: {}]
  %s2 = inlined_call_operand.hbm [shape: f32[512,128], index: 2, kind: input, shape index: {}]
  %s3 = inlined_call_operand.hbm [shape: f32[16,128], index: 3, kind: output, shape index: {}]
  %s4 = sld [smem:[#allocation0]]
  $region69: #{tpu_custom_call.1} parent=0
    _
  %s6 = ssub.s32 1, %s4
  %s7 = scalar_select 0, %s6, %s4
  $region1: #{tpu_custom_call.1} parent=0
    #allocation3 [shape = 'u8[8192]{0}', space=vmem, size = 0x2000, scoped, tag = 'input window, operand 0, single buffered']
    #allocation4 [shape = 's32[2]{0}', space=sflag, size = 0x8, scoped, tag = 'scoped memory for tpu_custom_call.1']
    #allocation5 [shape = 's32[2]{0}', space=sflag, size = 0x8, scoped, tag = 'scoped memory for tpu_custom_call.1']
    #allocation6 [shape = 'u8[524288]{0}', space=vmem, size = 0x80000, scoped, tag = 'input window, operand 1']
    #allocation7 [shape = 's32[2]{0}', space=sflag, size = 0x8, scoped, tag = 'scoped memory for tpu_custom_call.1']
    #allocation8 [shape = 'u8[262144]{0}', space=vmem, size = 0x40000, scoped, tag = 'input window, operand 2']
    #allocation9 [shape = 'u8[8192]{0}', space=vmem, size = 0x2000, scoped, tag = 'output window, operand 0, single buffered']
    %8 = vsyncpa [#allocation4], 0
    %9 = vsyncpa [#allocation7], 0
    %s10 = scalar_lea.sflag [#allocation7], 1
    %11 = vsyncpa %s10, 0
    %12 = vsyncpa [#allocation5], 0
    loop: start=0, step=1, limit=4
    $region2: #{tpu_custom_call.1} parent=1 // loop_pre_header
      _
    $region3: #{tpu_custom_call.1} parent=1 // loop_header
      %s14 = sphi 0, %s18
      %p15 = scmp.ge.s32.totalorder %s14, 4
      %s21 = sphi 0, %s40
      %s22 = sphi 0, %s36
      %s23 = sphi 0, %s32
      %s24 = sphi 0, %s21
      %s25 = sphi 0, %s22
      %s26 = sphi 0, %s23
      %s27 = sphi 0, %s24
      %s28 = sphi 0, %s25
      %s29 = sphi 0, %s26
      %s43 = sphi 0, %s45
      %s46 = sphi 0, %s43
      %s47 = sphi 0, %s46
      %s63 = sphi 0, %s47
      %s69 = sphi 0, %s71
      %s72 = sphi 0, %s69
      %s73 = sphi 0, %s72
      %s89 = sphi 0, %s73
      %s97 = sphi 0, %s99
      %s100 = sphi 0, %s97
      %s101 = sphi 0, %s100
      %s117 = sphi 0, %s101
      %s125 = sphi 0, %s127
      %s128 = sphi 0, %s125
      %s129 = sphi 0, %s128
      %s145 = sphi 0, %s129
    $region4: #{tpu_custom_call.1} parent=1 // loop_header_branch
      %17 = sbr.rel (%p15) target = $region8
    $region5: #{tpu_custom_call.1} parent=1 // loop_body
      %s19 = ssub.s32 %s14, 1
      %s20 = ssub.s32 %s14, 2
      %s30 = sadd.s32 1, %s23
      %p31 = scmp.ge.s32.totalorder %s30, 2
      %s32 = scalar_select %p31, 0, %s30
      %s33 = sadd.s32 1, %s22
      %s34 = scalar_select %p31, %s33, %s22
      %p35 = scmp.ge.s32.totalorder %s34, 1
      %s36 = scalar_select %p35, 0, %s34
      %s37 = sadd.s32 1, %s21
      %s38 = scalar_select %p35, %s37, %s21
      %p39 = scmp.ge.s32.totalorder %s38, 1
      %s40 = scalar_select %p39, 0, %s38
      %s41 = ssub.s32 %s21, %s40
      %p42 = scmp.eq.s32.totalorder %s41, 0
      %s44 = sadd.s32 %s43, 1
      %s45 = scalar_select %p42, %s43, %s44
      %p48 = pneg %p42
      %p49 = scmp.eq.s32.totalorder %s14, 1
      %p50 = por %p48, %p49
      %p51 = scmp.ne.s32.totalorder %s43, %s46
      %p52 = scmp.eq.s32.totalorder %s14, 0
      %p53 = por %p51, %p52
      %p54 = scmp.ne.s32.totalorder %s43, %s46
      %p55 = scmp.eq.s32.totalorder %s19, 1
      %p56 = por %p54, %p55
      %p57 = scmp.ne.s32.totalorder %s46, %s47
      %p58 = scmp.eq.s32.totalorder %s19, 0
      %p59 = por %p57, %p58
      %p60 = scmp.ne.s32.totalorder %s46, %s47
      %p61 = scmp.eq.s32.totalorder %s20, 1
      %p62 = por %p60, %p61
      %p64 = scmp.ne.s32.totalorder %s47, %s63
      %p65 = scmp.eq.s32.totalorder %s20, 0
      %p66 = por %p64, %p65
      %s67 = ssub.s32 %s23, %s32
      %p68 = scmp.eq.s32.totalorder %s67, 0
      %s70 = sadd.s32 %s69, 1
      %s71 = scalar_select %p68, %s69, %s70
      %p74 = pneg %p68
      %p75 = scmp.eq.s32.totalorder %s14, 1
      %p76 = por %p74, %p75
      %p77 = scmp.ne.s32.totalorder %s69, %s72
      %p78 = scmp.eq.s32.totalorder %s14, 0
      %p79 = por %p77, %p78
      %p80 = scmp.ne.s32.totalorder %s69, %s72
      %p81 = scmp.eq.s32.totalorder %s19, 1
      %p82 = por %p80, %p81
      %p83 = scmp.ne.s32.totalorder %s72, %s73
      %p84 = scmp.eq.s32.totalorder %s19, 0
      %p85 = por %p83, %p84
      %p86 = scmp.ne.s32.totalorder %s72, %s73
      %p87 = scmp.eq.s32.totalorder %s20, 1
      %p88 = por %p86, %p87
      %p90 = scmp.ne.s32.totalorder %s73, %s89
      %p91 = scmp.eq.s32.totalorder %s20, 0
      %p92 = por %p90, %p91
      %s93 = ssub.s32 %s23, %s32
      %s94 = ssub.s32 %s22, %s36
      %s95 = sor.u32 %s93, %s94
      %p96 = scmp.eq.s32.totalorder %s95, 0
      %s98 = sadd.s32 %s97, 1
      %s99 = scalar_select %p96, %s97, %s98
      %p102 = pneg %p96
      %p103 = scmp.eq.s32.totalorder %s14, 1
      %p104 = por %p102, %p103
      %p105 = scmp.ne.s32.totalorder %s97, %s100
      %p106 = scmp.eq.s32.totalorder %s14, 0
      %p107 = por %p105, %p106
      %p108 = scmp.ne.s32.totalorder %s97, %s100
      %p109 = scmp.eq.s32.totalorder %s19, 1
      %p110 = por %p108, %p109
      %p111 = scmp.ne.s32.totalorder %s100, %s101
      %p112 = scmp.eq.s32.totalorder %s19, 0
      %p113 = por %p111, %p112
      %p114 = scmp.ne.s32.totalorder %s100, %s101
      %p115 = scmp.eq.s32.totalorder %s20, 1
      %p116 = por %p114, %p115
      %p118 = scmp.ne.s32.totalorder %s101, %s117
      %p119 = scmp.eq.s32.totalorder %s20, 0
      %p120 = por %p118, %p119
      %s121 = ssub.s32 %s21, %s40
      %s122 = ssub.s32 %s22, %s36
      %s123 = sor.u32 %s121, %s122
      %p124 = scmp.eq.s32.totalorder %s123, 0
      %s126 = sadd.s32 %s125, 1
      %s127 = scalar_select %p124, %s125, %s126
      %p130 = pneg %p124
      %p131 = scmp.eq.s32.totalorder %s14, 1
      %p132 = por %p130, %p131
      %p133 = scmp.ne.s32.totalorder %s125, %s128
      %p134 = scmp.eq.s32.totalorder %s14, 0
      %p135 = por %p133, %p134
      %p136 = scmp.ne.s32.totalorder %s125, %s128
      %p137 = scmp.eq.s32.totalorder %s19, 1
      %p138 = por %p136, %p137
      %p139 = scmp.ne.s32.totalorder %s128, %s129
      %p140 = scmp.eq.s32.totalorder %s19, 0
      %p141 = por %p139, %p140
      %p142 = scmp.ne.s32.totalorder %s128, %s129
      %p143 = scmp.eq.s32.totalorder %s20, 1
      %p144 = por %p142, %p143
      %p146 = scmp.ne.s32.totalorder %s129, %s145
      %p147 = scmp.eq.s32.totalorder %s20, 0
      %p148 = por %p146, %p147
      %p149 = scmp.le.s32.totalorder 1, %s14
      %p150 = scmp.lt.s32.totalorder %s14, 3
      %p151 = pnand %p149, %p150
      %p152 = pneg %p151
      // Predicated region
      $region9: #{tpu_custom_call.1} parent=5 // pred_check
        _
      $region10: #{tpu_custom_call.1} parent=5 // pred_check_branch
        %154 = sbr.rel (%p151) target = $region12
      $region11: #{tpu_custom_call.1} parent=5 // pred_region
        %s155 = ssub.s32 %s14, 1
        // Predicated region
        $region13: #{tpu_custom_call.1} parent=11 // pred_check
          %p156 = pneg %p59
        $region14: #{tpu_custom_call.1} parent=11 // pred_check_branch
          %158 = sbr.rel (%p156) target = $region16
        $region15: #{tpu_custom_call.1} parent=11 // pred_region
          %s159 = smul.u32 2, %s24
          %s161 = ssub.s32 256, 256
          %162 = vsyncadd [#allocation4], %s161
          %s163 = smul.addr %s159, 128
          %s164 = scalar_lea.hbm %s0, %s163
          %s165 = sshll.u32 [#allocation3], 4
          %s166 = int_to_ptr.vmem [resolvable:$true] %s165
          %171 = dma.hbm_to_vmem [thread:$0]  %s164, 256, %s166, [#allocation4], 128, 128, 8
        $region16: #{tpu_custom_call.1} parent=11 // pred_fallthru
          _
      $region12: #{tpu_custom_call.1} parent=5 // pred_fallthru
        _
      %p172 = scmp.lt.s32.totalorder %s14, 2
      // Predicated region
      $region17: #{tpu_custom_call.1} parent=5 // pred_check
        %p173 = pneg %p172
      $region18: #{tpu_custom_call.1} parent=5 // pred_check_branch
        %175 = sbr.rel (%p173) target = $region20
      $region19: #{tpu_custom_call.1} parent=5 // pred_region
        // Predicated region
        $region21: #{tpu_custom_call.1} parent=19 // pred_check
          %p176 = pneg %p79
        $region22: #{tpu_custom_call.1} parent=19 // pred_check_branch
          %178 = sbr.rel (%p176) target = $region24
        $region23: #{tpu_custom_call.1} parent=19 // pred_region
          %s179 = sand.u32 %s14, 1
          %s180 = scalar_lea.sflag [#allocation7], %s179
          %s181 = sand.u32 %s69, 1
          %s182 = smul.addr %s181, 512
          %s183 = scalar_lea.vmem [#allocation6], %s182
          %s185 = ssub.s32 8192, 8192
          %186 = vsyncadd %s180, %s185
          %s187 = smul.addr %s23, 64
          %s188 = smul.addr %s187, 128
          %s189 = scalar_lea.hbm %s1, %s188
          %s190 = sshll.u32 %s183, 4
          %s191 = int_to_ptr.vmem [resolvable:$true] %s190
          %196 = dma.hbm_to_vmem [thread:$0]  %s189, 8192, %s191, %s180, 512, 512, 32
        $region24: #{tpu_custom_call.1} parent=19 // pred_fallthru
          _
        // Predicated region
        $region25: #{tpu_custom_call.1} parent=19 // pred_check
          %p197 = pneg %p107
        $region26: #{tpu_custom_call.1} parent=19 // pred_check_branch
          %199 = sbr.rel (%p197) target = $region28
        $region27: #{tpu_custom_call.1} parent=19 // pred_region
          %s200 = sand.u32 %s14, 1
          %s201 = scalar_lea.sflag [#allocation7], %s200
          %s202 = sand.u32 %s97, 1
          %s203 = smul.addr %s202, 256
          %s204 = scalar_lea.vmem [#allocation8], %s203
          %s205 = smul.u32 32, %s23
          %s207 = ssub.s32 4096, 4096
          %208 = vsyncadd %s201, %s207
          %s209 = sadd.s32 %s22, %s205
          %s210 = smul.addr %s209, 128
          %s211 = scalar_lea.hbm %s2, %s210
          %s212 = sshll.u32 %s204, 4
          %s213 = int_to_ptr.vmem [resolvable:$true] %s212
          %218 = dma.hbm_to_vmem [thread:$0]  %s211, 4096, %s213, %s201, 128, 128, 8
        $region28: #{tpu_custom_call.1} parent=19 // pred_fallthru
          _
      $region20: #{tpu_custom_call.1} parent=5 // pred_fallthru
        _
      %p219 = scmp.le.s32.totalorder 1, %s14
      %p220 = scmp.lt.s32.totalorder %s14, 3
      %p221 = pnand %p219, %p220
      %p222 = pneg %p221
      // Predicated region
      $region29: #{tpu_custom_call.1} parent=5 // pred_check
        _
      $region30: #{tpu_custom_call.1} parent=5 // pred_check_branch
        %224 = sbr.rel (%p221) target = $region32
      $region31: #{tpu_custom_call.1} parent=5 // pred_region
        %s225 = ssub.s32 %s14, 1
        // Predicated region
        $region33: #{tpu_custom_call.1} parent=31 // pred_check
          %p226 = pneg %p59
        $region34: #{tpu_custom_call.1} parent=31 // pred_check_branch
          %228 = sbr.rel (%p226) target = $region36
        $region35: #{tpu_custom_call.1} parent=31 // pred_region
          %229 = dma.done [#allocation4], 256
        $region36: #{tpu_custom_call.1} parent=31 // pred_fallthru
          _
        %s230 = sand.u32 %s19, 1
        %s231 = scalar_lea.sflag [#allocation7], %s230
        %s232 = sand.u32 %s72, 1
        %s233 = smul.addr %s232, 512
        %s234 = scalar_lea.vmem [#allocation6], %s233
        // Predicated region
        $region37: #{tpu_custom_call.1} parent=31 // pred_check
          %p235 = pneg %p85
        $region38: #{tpu_custom_call.1} parent=31 // pred_check_branch
          %237 = sbr.rel (%p235) target = $region40
        $region39: #{tpu_custom_call.1} parent=31 // pred_region
          %238 = dma.done %s231, 8192
        $region40: #{tpu_custom_call.1} parent=31 // pred_fallthru
          _
        %s239 = sand.u32 %s19, 1
        %s240 = scalar_lea.sflag [#allocation7], %s239
        %s241 = sand.u32 %s100, 1
        %s242 = smul.addr %s241, 256
        %s243 = scalar_lea.vmem [#allocation8], %s242
        // Predicated region
        $region41: #{tpu_custom_call.1} parent=31 // pred_check
          %p244 = pneg %p113
        $region42: #{tpu_custom_call.1} parent=31 // pred_check_branch
          %246 = sbr.rel (%p244) target = $region44
        $region43: #{tpu_custom_call.1} parent=31 // pred_region
          %247 = dma.done %s240, 4096
        $region44: #{tpu_custom_call.1} parent=31 // pred_fallthru
          _
        %p248 = pneg %p59
        %p249 = pneg %p56
        %s250 = sand.u32 %s19, 1
        %s251 = scalar_lea.sflag [#allocation7], %s250
        %s252 = sand.u32 %s72, 1
        %s253 = smul.addr %s252, 512
        %s254 = scalar_lea.vmem [#allocation6], %s253
        %p255 = pneg %p85
        %p256 = pneg %p82
        %s257 = sand.u32 %s19, 1
        %s258 = scalar_lea.sflag [#allocation7], %s257
        %s259 = sand.u32 %s100, 1
        %s260 = smul.addr %s259, 256
        %s261 = scalar_lea.vmem [#allocation8], %s260
        %p262 = pneg %p113
        %p263 = pneg %p110
        %p264 = pneg %p141
        %p265 = pneg %p138
        %s266 = smul.u32 2, %s24
        %s267 = smul.u32 32, %s26
        %s268 = smul.u32 2, %s24
        %v269 = vld [vmem:[#allocation3] sm:$0xff]
        %v270 = vld [vmem:[#allocation3 + $0x8] sm:$0xff]
        %v271 = vld [vmem:[%s234] sm:$0xff]
        %v272 = vld [vmem:[%s234 + $0x8] sm:$0xff]
        %v273 = vld [vmem:[%s234 + $0x10] sm:$0xff]
        %v274 = vld [vmem:[%s234 + $0x18] sm:$0xff]
        %v275 = vld [vmem:[%s234 + $0x20] sm:$0xff]
        %v276 = vld [vmem:[%s234 + $0x28] sm:$0xff]
        %v277 = vld [vmem:[%s234 + $0x30] sm:$0xff]
        %v278 = vld [vmem:[%s234 + $0x38] sm:$0xff]
        %v279 = vld [vmem:[%s234 + $0x40] sm:$0xff]
        %v280 = vld [vmem:[%s234 + $0x48] sm:$0xff]
        %v281 = vld [vmem:[%s234 + $0x50] sm:$0xff]
        %v282 = vld [vmem:[%s234 + $0x58] sm:$0xff]
        %v283 = vld [vmem:[%s234 + $0x60] sm:$0xff]
        %v284 = vld [vmem:[%s234 + $0x68] sm:$0xff]
        %v285 = vld [vmem:[%s234 + $0x70] sm:$0xff]
        %v286 = vld [vmem:[%s234 + $0x78] sm:$0xff]
        %v287 = vld [vmem:[%s234 + $0x80] sm:$0xff]
        %v288 = vld [vmem:[%s234 + $0x88] sm:$0xff]
        %v289 = vld [vmem:[%s234 + $0x90] sm:$0xff]
        %v290 = vld [vmem:[%s234 + $0x98] sm:$0xff]
        %v291 = vld [vmem:[%s234 + $0xa0] sm:$0xff]
        %v292 = vld [vmem:[%s234 + $0xa8] sm:$0xff]
        %v293 = vld [vmem:[%s234 + $0xb0] sm:$0xff]
        %v294 = vld [vmem:[%s234 + $0xb8] sm:$0xff]
        %v295 = vld [vmem:[%s234 + $0xc0] sm:$0xff]
        %v296 = vld [vmem:[%s234 + $0xc8] sm:$0xff]
        %v297 = vld [vmem:[%s234 + $0xd0] sm:$0xff]
        %v298 = vld [vmem:[%s234 + $0xd8] sm:$0xff]
        %v299 = vld [vmem:[%s234 + $0xe0] sm:$0xff]
        %v300 = vld [vmem:[%s234 + $0xe8] sm:$0xff]
        %v301 = vld [vmem:[%s234 + $0xf0] sm:$0xff]
        %v302 = vld [vmem:[%s234 + $0xf8] sm:$0xff]
        %v303 = vld [vmem:[%s234 + $0x100] sm:$0xff]
        %v304 = vld [vmem:[%s234 + $0x108] sm:$0xff]
        %v305 = vld [vmem:[%s234 + $0x110] sm:$0xff]
        %v306 = vld [vmem:[%s234 + $0x118] sm:$0xff]
        %v307 = vld [vmem:[%s234 + $0x120] sm:$0xff]
        %v308 = vld [vmem:[%s234 + $0x128] sm:$0xff]
        %v309 = vld [vmem:[%s234 + $0x130] sm:$0xff]
        %v310 = vld [vmem:[%s234 + $0x138] sm:$0xff]
        %v311 = vld [vmem:[%s234 + $0x140] sm:$0xff]
        %v312 = vld [vmem:[%s234 + $0x148] sm:$0xff]
        %v313 = vld [vmem:[%s234 + $0x150] sm:$0xff]
        %v314 = vld [vmem:[%s234 + $0x158] sm:$0xff]
        %v315 = vld [vmem:[%s234 + $0x160] sm:$0xff]
        %v316 = vld [vmem:[%s234 + $0x168] sm:$0xff]
        %v317 = vld [vmem:[%s234 + $0x170] sm:$0xff]
        %v318 = vld [vmem:[%s234 + $0x178] sm:$0xff]
        %v319 = vld [vmem:[%s234 + $0x180] sm:$0xff]
        %v320 = vld [vmem:[%s234 + $0x188] sm:$0xff]
        %v321 = vld [vmem:[%s234 + $0x190] sm:$0xff]
        %v322 = vld [vmem:[%s234 + $0x198] sm:$0xff]
        %v323 = vld [vmem:[%s234 + $0x1a0] sm:$0xff]
        %v324 = vld [vmem:[%s234 + $0x1a8] sm:$0xff]
        %v325 = vld [vmem:[%s234 + $0x1b0] sm:$0xff]
        %v326 = vld [vmem:[%s234 + $0x1b8] sm:$0xff]
        %v327 = vld [vmem:[%s234 + $0x1c0] sm:$0xff]
        %v328 = vld [vmem:[%s234 + $0x1c8] sm:$0xff]
        %v329 = vld [vmem:[%s234 + $0x1d0] sm:$0xff]
        %v330 = vld [vmem:[%s234 + $0x1d8] sm:$0xff]
        %v331 = vld [vmem:[%s234 + $0x1e0] sm:$0xff]
        %v332 = vld [vmem:[%s234 + $0x1e8] sm:$0xff]
        %v333 = vld [vmem:[%s234 + $0x1f0] sm:$0xff]
        %v334 = vld [vmem:[%s234 + $0x1f8] sm:$0xff]
        %335 = vmatprep.subr.mxu0 %v332
        %336 = vmatpush1.msra.mxu0 %v331
        %337 = vmatprep.subr.mxu0 %v328
        %338 = vmatpush1.msra.mxu0 %v327
        %339 = vmatprep.subr.mxu0 %v324
        %340 = vmatpush1.msra.mxu0 %v323
        %341 = vmatprep.subr.mxu0 %v320
        %342 = vmatpush1.msra.mxu0 %v319
        %343 = vmatprep.subr.mxu0 %v316
        %344 = vmatpush1.msra.mxu0 %v315
        %345 = vmatprep.subr.mxu0 %v312
        %346 = vmatpush1.msra.mxu0 %v311
        %347 = vmatprep.subr.mxu0 %v308
        %348 = vmatpush1.msra.mxu0 %v307
        %349 = vmatprep.subr.mxu0 %v304
        %350 = vmatpush1.msra.mxu0 %v303
        %351 = vmatprep.subr.mxu0 %v300
        %352 = vmatpush1.msra.mxu0 %v299
        %353 = vmatprep.subr.mxu0 %v296
        %354 = vmatpush1.msra.mxu0 %v295
        %355 = vmatprep.subr.mxu0 %v292
        %356 = vmatpush1.msra.mxu0 %v291
        %357 = vmatprep.subr.mxu0 %v288
        %358 = vmatpush1.msra.mxu0 %v287
        %359 = vmatprep.subr.mxu0 %v284
        %360 = vmatpush1.msra.mxu0 %v283
        %361 = vmatprep.subr.mxu0 %v280
        %362 = vmatpush1.msra.mxu0 %v279
        %363 = vmatprep.subr.mxu0 %v276
        %364 = vmatpush1.msra.mxu0 %v275
        %365 = vmatprep.subr.mxu0 %v272
        %366 = vmatpush1.msra.mxu0 %v271
        %367 = vmatprep.subr.mxu0 0.0
        %368 = vmatpush2.msra.mxu0 0.0
        %369 = vmatprep.subr.mxu0 0.0
        %370 = vmatpush2.msra.mxu0 0.0
        %371 = vmatprep.subr.mxu0 0.0
        %372 = vmatpush2.msra.mxu0 0.0
        %373 = vmatprep.subr.mxu0 0.0
        %374 = vmatpush2.msra.mxu0 0.0
        %375 = vmatprep.subr.mxu0 0.0
        %376 = vmatpush2.msra.mxu0 0.0
        %377 = vmatprep.subr.mxu0 0.0
        %378 = vmatpush2.msra.mxu0 0.0
        %379 = vmatprep.subr.mxu0 0.0
        %380 = vmatpush2.msra.mxu0 0.0
        %381 = vmatprep.subr.mxu0 0.0
        %382 = vmatpush2.msra.mxu0 0.0
        %383 = vmatprep.subr.mxu0 0.0
        %384 = vmatpush2.msra.mxu0 0.0
        %385 = vmatprep.subr.mxu0 0.0
        %386 = vmatpush2.msra.mxu0 0.0
        %387 = vmatprep.subr.mxu0 0.0
        %388 = vmatpush2.msra.mxu0 0.0
        %389 = vmatprep.subr.mxu0 0.0
        %390 = vmatpush2.msra.mxu0 0.0
        %391 = vmatprep.subr.mxu0 0.0
        %392 = vmatpush2.msra.mxu0 0.0
        %393 = vmatprep.subr.mxu0 0.0
        %394 = vmatpush2.msra.mxu0 0.0
        %395 = vmatprep.subr.mxu0 0.0
        %396 = vmatpush2.msra.mxu0 0.0
        %397 = vmatprep.subr.mxu0 0.0
        %398 = vmatpush2.msra.mxu0 0.0
        %399 = vmatprep.mubr.f32.mxu0 0.0
        %400 = vmatmul.mubr.f32.gmra.mxu0 %v269
        %v401 = vpop.f32.mrf.mxu0
        %v402 = vadd.f32 0.0, %v401
        %v403 = vpop.f32.mrf.mxu0
        %v404 = vadd.f32 0.0, %v403
        %405 = vmatprep.mubr.f32.mxu0 0.0
        %406 = vmatmul.mubr.f32.gmra.mxu0 %v270
        %v407 = vpop.f32.mrf.mxu0
        %v408 = vadd.f32 0.0, %v407
        %v409 = vpop.f32.mrf.mxu0
        %v410 = vadd.f32 0.0, %v409
        %411 = vdwg.mxu0
        %412 = vmatprep.subr.mxu0 %v334
        %413 = vmatpush1.msra.mxu0 %v333
        %414 = vmatprep.subr.mxu0 %v330
        %415 = vmatpush1.msra.mxu0 %v329
        %416 = vmatprep.subr.mxu0 %v326
        %417 = vmatpush1.msra.mxu0 %v325
        %418 = vmatprep.subr.mxu0 %v322
        %419 = vmatpush1.msra.mxu0 %v321
        %420 = vmatprep.subr.mxu0 %v318
        %421 = vmatpush1.msra.mxu0 %v317
        %422 = vmatprep.subr.mxu0 %v314
        %423 = vmatpush1.msra.mxu0 %v313
        %424 = vmatprep.subr.mxu0 %v310
        %425 = vmatpush1.msra.mxu0 %v309
        %426 = vmatprep.subr.mxu0 %v306
        %427 = vmatpush1.msra.mxu0 %v305
        %428 = vmatprep.subr.mxu0 %v302
        %429 = vmatpush1.msra.mxu0 %v301
        %430 = vmatprep.subr.mxu0 %v298
        %431 = vmatpush1.msra.mxu0 %v297
        %432 = vmatprep.subr.mxu0 %v294
        %433 = vmatpush1.msra.mxu0 %v293
        %434 = vmatprep.subr.mxu0 %v290
        %435 = vmatpush1.msra.mxu0 %v289
        %436 = vmatprep.subr.mxu0 %v286
        %437 = vmatpush1.msra.mxu0 %v285
        %438 = vmatprep.subr.mxu0 %v282
        %439 = vmatpush1.msra.mxu0 %v281
        %440 = vmatprep.subr.mxu0 %v278
        %441 = vmatpush1.msra.mxu0 %v277
        %442 = vmatprep.subr.mxu0 %v274
        %443 = vmatpush1.msra.mxu0 %v273
        %444 = vmatprep.subr.mxu0 0.0
        %445 = vmatpush2.msra.mxu0 0.0
        %446 = vmatprep.subr.mxu0 0.0
        %447 = vmatpush2.msra.mxu0 0.0
        %448 = vmatprep.subr.mxu0 0.0
        %449 = vmatpush2.msra.mxu0 0.0
        %450 = vmatprep.subr.mxu0 0.0
        %451 = vmatpush2.msra.mxu0 0.0
        %452 = vmatprep.subr.mxu0 0.0
        %453 = vmatpush2.msra.mxu0 0.0
        %454 = vmatprep.subr.mxu0 0.0
        %455 = vmatpush2.msra.mxu0 0.0
        %456 = vmatprep.subr.mxu0 0.0
        %457 = vmatpush2.msra.mxu0 0.0
        %458 = vmatprep.subr.mxu0 0.0
        %459 = vmatpush2.msra.mxu0 0.0
        %460 = vmatprep.subr.mxu0 0.0
        %461 = vmatpush2.msra.mxu0 0.0
        %462 = vmatprep.subr.mxu0 0.0
        %463 = vmatpush2.msra.mxu0 0.0
        %464 = vmatprep.subr.mxu0 0.0
        %465 = vmatpush2.msra.mxu0 0.0
        %466 = vmatprep.subr.mxu0 0.0
        %467 = vmatpush2.msra.mxu0 0.0
        %468 = vmatprep.subr.mxu0 0.0
        %469 = vmatpush2.msra.mxu0 0.0
        %470 = vmatprep.subr.mxu0 0.0
        %471 = vmatpush2.msra.mxu0 0.0
        %472 = vmatprep.subr.mxu0 0.0
        %473 = vmatpush2.msra.mxu0 0.0
        %474 = vmatprep.subr.mxu0 0.0
        %475 = vmatpush2.msra.mxu0 0.0
        %476 = vmatprep.mubr.f32.mxu0 0.0
        %477 = vmatmul.mubr.f32.gmra.mxu0 %v269
        %v478 = vpop.f32.mrf.mxu0
        %v479 = vadd.f32 0.0, %v478
        %v480 = vpop.f32.mrf.mxu0
        %v481 = vadd.f32 0.0, %v480
        %482 = vmatprep.mubr.f32.mxu0 0.0
        %483 = vmatmul.mubr.f32.gmra.mxu0 %v270
        %v484 = vpop.f32.mrf.mxu0
        %v485 = vadd.f32 0.0, %v484
        %v486 = vpop.f32.mrf.mxu0
        %v487 = vadd.f32 0.0, %v486
        %488 = vdwg.mxu0
        %v489 = vxor.u32 %v402, 2147483648
        %v490 = vxor.u32 %v404, 2147483648
        %v491 = vxor.u32 %v408, 2147483648
        %v492 = vxor.u32 %v410, 2147483648
        %v493 = vmul.f32 %v489, 1.442695
        %v494 = vpow.pop %v493
        %v495 = vmul.f32 %v490, 1.442695
        %v496 = vpow.pop %v495
        %v497 = vmul.f32 %v491, 1.442695
        %v498 = vpow.pop %v497
        %v499 = vmul.f32 %v492, 1.442695
        %v500 = vpow.pop %v499
        %v501 = vadd.f32 %v494, 1.0
        %v502 = vadd.f32 %v496, 1.0
        %v503 = vadd.f32 %v498, 1.0
        %v504 = vadd.f32 %v500, 1.0
        %v505 = vrcp.pop %v501
        %v506 = vmul.f32 1.0, %v505
        %v507 = vrcp.pop %v502
        %v508 = vmul.f32 1.0, %v507
        %v509 = vrcp.pop %v503
        %v510 = vmul.f32 1.0, %v509
        %v511 = vrcp.pop %v504
        %v512 = vmul.f32 1.0, %v511
        %v513 = vmul.f32 %v402, %v506
        %v514 = vmul.f32 %v404, %v508
        %v515 = vmul.f32 %v408, %v510
        %v516 = vmul.f32 %v410, %v512
        %v517 = vmul.f32 %v513, %v479
        %v518 = vmul.f32 %v514, %v481
        %v519 = vmul.f32 %v515, %v485
        %v520 = vmul.f32 %v516, %v487
        %v521 = vld [vmem:[%s243] sm:$0xff]
        %v522 = vld [vmem:[%s243 + $0x8] sm:$0xff]
        %v523 = vld [vmem:[%s243 + $0x10] sm:$0xff]
        %v524 = vld [vmem:[%s243 + $0x18] sm:$0xff]
        %v525 = vld [vmem:[%s243 + $0x20] sm:$0xff]
        %v526 = vld [vmem:[%s243 + $0x28] sm:$0xff]
        %v527 = vld [vmem:[%s243 + $0x30] sm:$0xff]
        %v528 = vld [vmem:[%s243 + $0x38] sm:$0xff]
        %v529 = vld [vmem:[%s243 + $0x40] sm:$0xff]
        %v530 = vld [vmem:[%s243 + $0x48] sm:$0xff]
        %v531 = vld [vmem:[%s243 + $0x50] sm:$0xff]
        %v532 = vld [vmem:[%s243 + $0x58] sm:$0xff]
        %v533 = vld [vmem:[%s243 + $0x60] sm:$0xff]
        %v534 = vld [vmem:[%s243 + $0x68] sm:$0xff]
        %v535 = vld [vmem:[%s243 + $0x70] sm:$0xff]
        %v536 = vld [vmem:[%s243 + $0x78] sm:$0xff]
        %v537 = vld [vmem:[%s243 + $0x80] sm:$0xff]
        %v538 = vld [vmem:[%s243 + $0x88] sm:$0xff]
        %v539 = vld [vmem:[%s243 + $0x90] sm:$0xff]
        %v540 = vld [vmem:[%s243 + $0x98] sm:$0xff]
        %v541 = vld [vmem:[%s243 + $0xa0] sm:$0xff]
        %v542 = vld [vmem:[%s243 + $0xa8] sm:$0xff]
        %v543 = vld [vmem:[%s243 + $0xb0] sm:$0xff]
        %v544 = vld [vmem:[%s243 + $0xb8] sm:$0xff]
        %v545 = vld [vmem:[%s243 + $0xc0] sm:$0xff]
        %v546 = vld [vmem:[%s243 + $0xc8] sm:$0xff]
        %v547 = vld [vmem:[%s243 + $0xd0] sm:$0xff]
        %v548 = vld [vmem:[%s243 + $0xd8] sm:$0xff]
        %v549 = vld [vmem:[%s243 + $0xe0] sm:$0xff]
        %v550 = vld [vmem:[%s243 + $0xe8] sm:$0xff]
        %v551 = vld [vmem:[%s243 + $0xf0] sm:$0xff]
        %v552 = vld [vmem:[%s243 + $0xf8] sm:$0xff]
        %553 = vmatprep.subr.mxu0 0.0
        %554 = vmatpush1.msra.mxu0 %v536
        %555 = vmatprep.subr.mxu0 0.0
        %556 = vmatpush1.msra.mxu0 %v535
        %557 = vmatprep.subr.mxu0 0.0
        %558 = vmatpush1.msra.mxu0 %v534
        %559 = vmatprep.subr.mxu0 0.0
        %560 = vmatpush1.msra.mxu0 %v533
        %561 = vmatprep.subr.mxu0 0.0
        %562 = vmatpush1.msra.mxu0 %v532
        %563 = vmatprep.subr.mxu0 0.0
        %564 = vmatpush1.msra.mxu0 %v531
        %565 = vmatprep.subr.mxu0 0.0
        %566 = vmatpush1.msra.mxu0 %v530
        %567 = vmatprep.subr.mxu0 0.0
        %568 = vmatpush1.msra.mxu0 %v529
        %569 = vmatprep.subr.mxu0 0.0
        %570 = vmatpush1.msra.mxu0 %v528
        %571 = vmatprep.subr.mxu0 0.0
        %572 = vmatpush1.msra.mxu0 %v527
        %573 = vmatprep.subr.mxu0 0.0
        %574 = vmatpush1.msra.mxu0 %v526
        %575 = vmatprep.subr.mxu0 0.0
        %576 = vmatpush1.msra.mxu0 %v525
        %577 = vmatprep.subr.mxu0 0.0
        %578 = vmatpush1.msra.mxu0 %v524
        %579 = vmatprep.subr.mxu0 0.0
        %580 = vmatpush1.msra.mxu0 %v523
        %581 = vmatprep.subr.mxu0 0.0
        %582 = vmatpush1.msra.mxu0 %v522
        %583 = vmatprep.subr.mxu0 0.0
        %584 = vmatpush1.msra.mxu0 %v521
        %585 = vmatprep.subr.mxu0 0.0
        %586 = vmatpush2.msra.mxu0 %v552
        %587 = vmatprep.subr.mxu0 0.0
        %588 = vmatpush2.msra.mxu0 %v551
        %589 = vmatprep.subr.mxu0 0.0
        %590 = vmatpush2.msra.mxu0 %v550
        %591 = vmatprep.subr.mxu0 0.0
        %592 = vmatpush2.msra.mxu0 %v549
        %593 = vmatprep.subr.mxu0 0.0
        %594 = vmatpush2.msra.mxu0 %v548
        %595 = vmatprep.subr.mxu0 0.0
        %596 = vmatpush2.msra.mxu0 %v547
        %597 = vmatprep.subr.mxu0 0.0
        %598 = vmatpush2.msra.mxu0 %v546
        %599 = vmatprep.subr.mxu0 0.0
        %600 = vmatpush2.msra.mxu0 %v545
        %601 = vmatprep.subr.mxu0 0.0
        %602 = vmatpush2.msra.mxu0 %v544
        %603 = vmatprep.subr.mxu0 0.0
        %604 = vmatpush2.msra.mxu0 %v543
        %605 = vmatprep.subr.mxu0 0.0
        %606 = vmatpush2.msra.mxu0 %v542
        %607 = vmatprep.subr.mxu0 0.0
        %608 = vmatpush2.msra.mxu0 %v541
        %609 = vmatprep.subr.mxu0 0.0
        %610 = vmatpush2.msra.mxu0 %v540
        %611 = vmatprep.subr.mxu0 0.0
        %612 = vmatpush2.msra.mxu0 %v539
        %613 = vmatprep.subr.mxu0 0.0
        %614 = vmatpush2.msra.mxu0 %v538
        %615 = vmatprep.subr.mxu0 0.0
        %616 = vmatpush2.msra.mxu0 %v537
        %617 = vmatprep.mubr.f32.mxu0 %v518
        %618 = vmatmul.mubr.f32.gmra.mxu0 %v517
        %v619 = vpop.f32.mrf.mxu0
        %v620 = vadd.f32 0.0, %v619
        %v621 = vpop.f32.mrf.mxu0
        %622 = vmatprep.mubr.f32.mxu0 %v520
        %623 = vmatmul.mubr.f32.gmra.mxu0 %v519
        %v624 = vpop.f32.mrf.mxu0
        %v625 = vadd.f32 0.0, %v624
        %v626 = vpop.f32.mrf.mxu0
        %627 = vdwg.mxu0
        %p628 = scmp.eq.s32.totalorder %s26, 0
        // Predicated region
        $region45: #{tpu_custom_call.1} parent=31 // pred_check
          %p629 = pneg %p628
        $region46: #{tpu_custom_call.1} parent=31 // pred_check_branch
          %631 = sbr.rel (%p629) target = $region48
        $region47: #{tpu_custom_call.1} parent=31 // pred_region
          %632 = vst [vmem:[#allocation2] sm:$0xff] %v620
          %633 = vst [vmem:[#allocation2 + $0x8] sm:$0xff] %v625
        $region48: #{tpu_custom_call.1} parent=31 // pred_fallthru
          _
        %p634 = scmp.ne.s32.totalorder %s26, 0
        // Predicated region
        $region49: #{tpu_custom_call.1} parent=31 // pred_check
          %p635 = pneg %p634
        $region50: #{tpu_custom_call.1} parent=31 // pred_check_branch
          %637 = sbr.rel (%p635) target = $region52
        $region51: #{tpu_custom_call.1} parent=31 // pred_region
          %v638 = vld [vmem:[#allocation2] sm:$0xff]
          %v639 = vld [vmem:[#allocation2 + $0x8] sm:$0xff]
          %v640 = vadd.f32 %v638, %v620
          %v641 = vadd.f32 %v639, %v625
          %642 = vst [vmem:[#allocation2] sm:$0xff] %v640
          %643 = vst [vmem:[#allocation2 + $0x8] sm:$0xff] %v641
        $region52: #{tpu_custom_call.1} parent=31 // pred_fallthru
          _
        %p644 = scmp.eq.s32.totalorder %s26, 1
        // Predicated region
        $region53: #{tpu_custom_call.1} parent=31 // pred_check
          %p645 = pneg %p644
        $region54: #{tpu_custom_call.1} parent=31 // pred_check_branch
          %647 = sbr.rel (%p645) target = $region56
        $region55: #{tpu_custom_call.1} parent=31 // pred_region
          %v648 = vld [vmem:[#allocation2] sm:$0xff]
          %v649 = vld [vmem:[#allocation2 + $0x8] sm:$0xff]
          %650 = vst [vmem:[#allocation9] sm:$0xff] %v648
          %651 = vst [vmem:[#allocation9 + $0x8] sm:$0xff] %v649
        $region56: #{tpu_custom_call.1} parent=31 // pred_fallthru
          _
        // Predicated region
        $region57: #{tpu_custom_call.1} parent=31 // pred_check
          %p652 = pneg %p138
        $region58: #{tpu_custom_call.1} parent=31 // pred_check_branch
          %654 = sbr.rel (%p652) target = $region60
        $region59: #{tpu_custom_call.1} parent=31 // pred_region
          %s655 = smul.u32 2, %s24
          %s657 = ssub.s32 256, 256
          %658 = vsyncadd [#allocation5], %s657
          %s659 = sadd.s32 %s25, %s655
          %s660 = smul.addr %s659, 128
          %s661 = scalar_lea.hbm %s3, %s660
          %s662 = sshll.u32 [#allocation9], 4
          %s663 = int_to_ptr.vmem [resolvable:$true] %s662
          %668 = dma.vmem_to_hbm [thread:$0]  %s663, 256, %s661, [#allocation5], 128, 128, 8
        $region60: #{tpu_custom_call.1} parent=31 // pred_fallthru
          _
        // Predicated region
        $region61: #{tpu_custom_call.1} parent=31 // pred_check
          %p669 = pneg %p138
        $region62: #{tpu_custom_call.1} parent=31 // pred_check_branch
          %671 = sbr.rel (%p669) target = $region64
        $region63: #{tpu_custom_call.1} parent=31 // pred_region
          %672 = dma.done [#allocation5], 256
        $region64: #{tpu_custom_call.1} parent=31 // pred_fallthru
          _
      $region32: #{tpu_custom_call.1} parent=5 // pred_fallthru
        _
      %p673 = scmp.le.s32.totalorder 2, %s14
      // Predicated region
      $region65: #{tpu_custom_call.1} parent=5 // pred_check
        %p674 = pneg %p673
      $region66: #{tpu_custom_call.1} parent=5 // pred_check_branch
        %676 = sbr.rel (%p674) target = $region68
      $region67: #{tpu_custom_call.1} parent=5 // pred_region
        %s677 = ssub.s32 %s14, 2
      $region68: #{tpu_custom_call.1} parent=5 // pred_fallthru
        _
    $region6: #{tpu_custom_call.1} parent=1 // loop_footer
      %s18 = sadd.s32 1, %s14
    $region7: #{tpu_custom_call.1} parent=1 // loop_footer_branch
      %13 = sbr.rel target = $region3
    $region8: #{tpu_custom_call.1} parent=1 // loop_exit
      _
    %678 = vsyncpa [#allocation4], 1
    %s679 = scalar_lea.sflag [#allocation4], 1
    %680 = vsyncpa %s679, 1
    %681 = vsyncpa [#allocation7], 1
    %s682 = scalar_lea.sflag [#allocation7], 1
    %683 = vsyncpa %s682, 1
    %684 = vsyncpa [#allocation5], 1
    %s685 = scalar_lea.sflag [#allocation5], 1
    %686 = vsyncpa %s685, 1

</llo_original>
